<compile_context>
chip_gen: v7x
topology: tpu7x:2x2x1
jax: 0.10.0
libtpu: 0.0.40
codegen_flags: <defaults>
</compile_context>

<pallas_src>
import functools

import jax
import jax.numpy as jnp
import numpy as np
from jax.experimental import pallas as pl
from jax.experimental.pallas import tpu as pltpu


def _round_up(v: int, m: int) -> int:
    return ((v + m - 1) // m) * m


def _gcn_kernel(a_ref, x_ref, w_ref, o_ref, acc_ref, *, apply_w_last):
    # a_ref:   (TM, TK)           adjacency tile (row tile m, contraction tile k)
    # x_ref:   (1, TK, F_in_p)    node features for batch b, contraction tile k
    # w_ref:   (F_in_p, F_out_p)  weight (grid-invariant block)
    # o_ref:   (1, TM, F_out_p)   output tile for (b, m)
    # acc_ref: (TM, F_acc) f32    accumulator over the contraction (k) axis
    k = pl.program_id(2)

    @pl.when(k == 0)
    def _init():
        acc_ref[...] = jnp.zeros_like(acc_ref)

    if apply_w_last:
        # (A @ x) @ W: accumulate A_mk @ x_bk at width F_in_p.
        acc_ref[...] += jnp.dot(
            a_ref[...], x_ref[0], preferred_element_type=jnp.float32
        )
    else:
        # A @ (x @ W): support_k = x_bk @ W, then accumulate A_mk @ support_k.
        support = jnp.dot(
            x_ref[0], w_ref[...], preferred_element_type=jnp.float32
        ).astype(a_ref.dtype)
        acc_ref[...] += jnp.dot(
            a_ref[...], support, preferred_element_type=jnp.float32
        )

    @pl.when(k == pl.num_programs(2) - 1)
    def _store():
        if apply_w_last:
            out = jnp.dot(
                acc_ref[...].astype(w_ref.dtype),
                w_ref[...],
                preferred_element_type=jnp.float32,
            )
        else:
            out = acc_ref[...]
        o_ref[0] = out.astype(o_ref.dtype)


def graph_conv_layer(
    x,
    weight,
    adj_matrix,
    *,
    compute_dtype=jnp.bfloat16,
    node_tile: int = 256,
):
    """out[b] = adj_matrix @ (x[b] @ weight).

    x: (B, N, F_in), weight: (F_in, F_out), adj_matrix: (N, N).
    Returns (B, N, F_out) in x.dtype. MXU operands run in `compute_dtype`
    (always with f32 accumulation).
    """
    B, N, F_in = x.shape
    assert weight.shape[0] == F_in
    F_out = weight.shape[1]
    assert adj_matrix.shape == (N, N)
    out_dtype = x.dtype

    # Lane-dense / MXU-friendly padded sizes (multiples of 128).
    f_in_p = _round_up(F_in, 128)
    f_out_p = _round_up(F_out, 128)
    tn = min(node_tile, _round_up(N, 128))  # node tile, multiple of 128
    n_p = _round_up(N, tn)
    m_tiles = n_p // tn
    k_tiles = n_p // tn

    # Cheaper association: (A @ x) @ W if F_in <= F_out, else A @ (x @ W).
    apply_w_last = F_in <= F_out
    f_acc = f_in_p if apply_w_last else f_out_p

    cdt = jnp.dtype(compute_dtype)
    x_p = jnp.pad(x.astype(cdt), ((0, 0), (0, n_p - N), (0, f_in_p - F_in)))
    w_p = jnp.pad(weight.astype(cdt), ((0, f_in_p - F_in), (0, f_out_p - F_out)))
    a_p = jnp.pad(adj_matrix.astype(cdt), ((0, n_p - N), (0, n_p - N)))

    # Advisory cost estimate for XLA's scheduler around the custom call.
    if apply_w_last:
        flops = 2 * B * (n_p * n_p * f_in_p + n_p * f_in_p * f_out_p)
    else:
        flops = 2 * B * (m_tiles * n_p * f_in_p * f_out_p + n_p * n_p * f_out_p)
    bytes_accessed = (
        B * n_p * n_p * cdt.itemsize                 # A streamed once per batch
        + m_tiles * B * n_p * f_in_p * cdt.itemsize  # x re-streamed per row tile
        + f_in_p * f_out_p * cdt.itemsize            # W fetched once
        + B * n_p * f_out_p * jnp.dtype(out_dtype).itemsize
    )

    grid_spec = pltpu.PrefetchScalarGridSpec(
        num_scalar_prefetch=0,
        grid=(B, m_tiles, k_tiles),
        in_specs=[
            pl.BlockSpec((tn, tn), lambda b, m, k: (m, k)),             # A tile
            pl.BlockSpec((1, tn, f_in_p), lambda b, m, k: (b, k, 0)),   # x tile
            pl.BlockSpec((f_in_p, f_out_p), lambda b, m, k: (0, 0)),    # W (invariant)
        ],
        out_specs=pl.BlockSpec((1, tn, f_out_p), lambda b, m, k: (b, m, 0)),
        scratch_shapes=[pltpu.VMEM((tn, f_acc), jnp.float32)],
    )

    out_p = pl.pallas_call(
        functools.partial(_gcn_kernel, apply_w_last=apply_w_last),
        out_shape=jax.ShapeDtypeStruct((B, n_p, f_out_p), out_dtype),
        grid_spec=grid_spec,
        compiler_params=pltpu.CompilerParams(
            dimension_semantics=("parallel", "parallel", "arbitrary"),
            vmem_limit_bytes=32 * 1024 * 1024,
        ),
        cost_estimate=pl.CostEstimate(
            flops=flops, transcendentals=0, bytes_accessed=bytes_accessed
        ),
    )(a_p, x_p, w_p)

    return out_p[:, :N, :F_out]


def xavier_uniform(key, fan_in, fan_out, dtype=jnp.float32):
    # matches torch.nn.init.xavier_uniform_: bound = sqrt(6 / (fan_in + fan_out))
    bound = (6.0 / (fan_in + fan_out)) ** 0.5
    return jax.random.uniform(key, (fan_in, fan_out), dtype, minval=-bound, maxval=bound)


if __name__ == "__main__":
    key = jax.random.PRNGKey(0)
    k_x, k_w, k_a = jax.random.split(key, 3)

    B, N, F_in, F_out = 2, 16, 4, 8  # small deterministic shapes

    x = jax.random.normal(k_x, (B, N, F_in), dtype=jnp.float32)
    weight = xavier_uniform(k_w, F_in, F_out)
    adj = jax.random.uniform(k_a, (N, N), dtype=jnp.float32)

    # Float64 numpy reference of the exact PyTorch math: adj @ (x @ W).
    x64 = np.asarray(x, dtype=np.float64)
    w64 = np.asarray(weight, dtype=np.float64)
    a64 = np.asarray(adj, dtype=np.float64)
    ref = np.einsum("nm,bmf->bnf", a64, np.einsum("bni,io->bno", x64, w64))

    # Default path: bf16 MXU operands, f32 accumulation.
    out_bf16 = jax.block_until_ready(graph_conv_layer(x, weight, adj))
    assert out_bf16.shape == (B, N, F_out)
    assert out_bf16.dtype == x.dtype
    # Tolerance covers bf16 rounding of inputs / intermediates (accumulation is f32).
    assert np.allclose(np.asarray(out_bf16, np.float64), ref, atol=5e-2, rtol=5e-2)

    # Full-precision-input path.
    out_f32 = jax.block_until_ready(
        graph_conv_layer(x, weight, adj, compute_dtype=jnp.float32)
    )
    assert out_f32.shape == (B, N, F_out)
    assert np.allclose(np.asarray(out_f32, np.float64), ref, atol=5e-2, rtol=5e-2)

    print("KERNEL_OK")
</pallas_src>

<mosaic_0001>
module attributes {stable_mosaic.version = 11 : i64} {
  func.func @_gcn_kernel(%arg0: i32, %arg1: i32, %arg2: i32, %arg3: memref<128x128xbf16, #tpu.memory_space<vmem>>, %arg4: memref<1x128x128xbf16, #tpu.memory_space<vmem>>, %arg5: memref<128x128xbf16, #tpu.memory_space<vmem>>, %arg6: memref<1x128x128xf32, #tpu.memory_space<vmem>>, %arg7: memref<128x128xf32, #tpu.memory_space<vmem>>) attributes {dimension_semantics = [#tpu.dimension_semantics<parallel>, #tpu.dimension_semantics<parallel>, #tpu.dimension_semantics<arbitrary>], iteration_bounds = array<i64: 2, 1, 1>, scalar_prefetch = 0 : i64, scratch_operands = 1 : i64, tpu.core_type = #tpu.core_type<tc>, window_params = [{transform_indices = @transform_0, window_bounds = array<i64: 128, 128>}, {transform_indices = @transform_1, window_bounds = array<i64: 1, 128, 128>}, {pipeline_mode = #tpu.pipeline_mode<synchronous>, transform_indices = @transform_2, window_bounds = array<i64: 128, 128>}, {transform_indices = @transform_3, window_bounds = array<i64: 1, 128, 128>}]} {
    %c0_i32 = arith.constant 0 : i32
    %0 = arith.cmpi eq, %arg2, %c0_i32 : i32
    %1 = arith.extui %0 : i1 to i32
    %c0_i32_0 = arith.constant 0 : i32
    %2 = arith.cmpi ne, %1, %c0_i32_0 : i32
    scf.if %2 {
      %cst_11 = arith.constant 0.000000e+00 : f32
      %13 = vector.broadcast %cst_11 : f32 to vector<128x128xf32>
      %c0_12 = arith.constant 0 : index
      %c0_13 = arith.constant 0 : index
      %14 = vector.load %arg7[%c0_12, %c0_13] : memref<128x128xf32, #tpu.memory_space<vmem>>, vector<128x128xf32>
      tpu.vector_store %arg7[%c0_12, %c0_13], %13 {strides = array<i32>} : memref<128x128xf32, #tpu.memory_space<vmem>>, vector<128x128xf32>,
    } else {
    }
    %c0 = arith.constant 0 : index
    %c0_1 = arith.constant 0 : index
    %3 = vector.load %arg7[%c0, %c0_1] : memref<128x128xf32, #tpu.memory_space<vmem>>, vector<128x128xf32>
    %c0_2 = arith.constant 0 : index
    %c0_3 = arith.constant 0 : index
    %4 = vector.load %arg3[%c0_2, %c0_3] : memref<128x128xbf16, #tpu.memory_space<vmem>>, vector<128x128xbf16>
    %c0_4 = arith.constant 0 : index
    %c0_5 = arith.constant 0 : index
    %c0_6 = arith.constant 0 : index
    %5 = vector.load %arg4[%c0_4, %c0_5, %c0_6] : memref<1x128x128xbf16, #tpu.memory_space<vmem>>, vector<1x128x128xbf16>
    %6 = vector.shape_cast %5 : vector<1x128x128xbf16> to vector<128x128xbf16>
    %cst = arith.constant dense<0.000000e+00> : vector<128x128xf32>
    %7 = tpu.matmul %4, %6, %cst {dimension_numbers = #tpu.dot_dimension_numbers<[1], [0], [0], [1], [0, 0, 1, 1], [], []>} : vector<128x128xbf16>, vector<128x128xbf16>, vector<128x128xf32> -> vector<128x128xf32>
    %8 = arith.addf %3, %7 : vector<128x128xf32>
    %c0_7 = arith.constant 0 : index
    %c0_8 = arith.constant 0 : index
    %9 = vector.load %arg7[%c0_7, %c0_8] : memref<128x128xf32, #tpu.memory_space<vmem>>, vector<128x128xf32>
    tpu.vector_store %arg7[%c0_7, %c0_8], %8 {strides = array<i32>} : memref<128x128xf32, #tpu.memory_space<vmem>>, vector<128x128xf32>,
    %c0_i32_9 = arith.constant 0 : i32
    %10 = arith.cmpi eq, %arg2, %c0_i32_9 : i32
    %11 = arith.extui %10 : i1 to i32
    %c0_i32_10 = arith.constant 0 : i32
    %12 = arith.cmpi ne, %11, %c0_i32_10 : i32
    scf.if %12 {
      %c0_11 = arith.constant 0 : index
      %c0_12 = arith.constant 0 : index
      %13 = vector.load %arg7[%c0_11, %c0_12] : memref<128x128xf32, #tpu.memory_space<vmem>>, vector<128x128xf32>
      %14 = arith.truncf %13 : vector<128x128xf32> to vector<128x128xbf16>
      %c0_13 = arith.constant 0 : index
      %c0_14 = arith.constant 0 : index
      %15 = vector.load %arg5[%c0_13, %c0_14] : memref<128x128xbf16, #tpu.memory_space<vmem>>, vector<128x128xbf16>
      %cst_15 = arith.constant dense<0.000000e+00> : vector<128x128xf32>
      %16 = tpu.matmul %14, %15, %cst_15 {dimension_numbers = #tpu.dot_dimension_numbers<[1], [0], [0], [1], [0, 0, 1, 1], [], []>} : vector<128x128xbf16>, vector<128x128xbf16>, vector<128x128xf32> -> vector<128x128xf32>
      %c0_16 = arith.constant 0 : index
      %c0_17 = arith.constant 0 : index
      %c0_18 = arith.constant 0 : index
      %17 = vector.load %arg6[%c0_16, %c0_17, %c0_18] : memref<1x128x128xf32, #tpu.memory_space<vmem>>, vector<1x128x128xf32>
      %18 = vector.shape_cast %17 : vector<1x128x128xf32> to vector<128x128xf32>
      %19 = vector.shape_cast %16 : vector<128x128xf32> to vector<1x128x128xf32>
      tpu.vector_store %arg6[%c0_16, %c0_17, %c0_18], %19 {strides = array<i32>} : memref<1x128x128xf32, #tpu.memory_space<vmem>>, vector<1x128x128xf32>,
    } else {
    }
    return
  }
  func.func @transform_0(%arg0: i32, %arg1: i32, %arg2: i32) -> (i32, i32) {
    %c0_i32 = arith.constant 0 : i32
    return %arg1, %arg2 : i32, i32
  }
  func.func @transform_1(%arg0: i32, %arg1: i32, %arg2: i32) -> (i32, i32, i32) {
    %c0_i32 = arith.constant 0 : i32
    %c0_i32_0 = arith.constant 0 : i32
    return %arg0, %arg2, %c0_i32 : i32, i32, i32
  }
  func.func @transform_2(%arg0: i32, %arg1: i32, %arg2: i32) -> (i32, i32) {
    %c0_i32 = arith.constant 0 : i32
    %c0_i32_0 = arith.constant 0 : i32
    %c0_i32_1 = arith.constant 0 : i32
    return %c0_i32, %c0_i32_0 : i32, i32
  }
  func.func @transform_3(%arg0: i32, %arg1: i32, %arg2: i32) -> (i32, i32, i32) {
    %c0_i32 = arith.constant 0 : i32
    %c0_i32_0 = arith.constant 0 : i32
    return %arg0, %arg1, %c0_i32 : i32, i32, i32
  }
}

</mosaic_0001>

<llo_original>
// kernel: tpu_custom_call.1
$region0: #{tpu_custom_call.1}
  #allocation0 [shape = 'u32[]', space=smem, size = 0x4, offset = 0x4, fixed_abs, tag = 'smem constant byte address 0x4 - core index']
  #allocation1 [shape = 'u32[144,128]{1,0:T(1,128)}', space=vmem, size = 0x12000, scoped, tag = 'internal scratch']
  #allocation2 [shape = 'f32[128,128]{1,0:T(8,128)}', space=vmem, size = 0x10000, scoped, tag = 'scratch operand']
  %s0 = inlined_call_operand.hbm [shape: bf16[128,128], index: 0, kind: input, shape index: {}]
  %s1 = inlined_call_operand.hbm [shape: bf16[2,128,128], index: 1, kind: input, shape index: {}]
  %s2 = inlined_call_operand.hbm [shape: bf16[128,128], index: 2, kind: input, shape index: {}]
  %s3 = inlined_call_operand.hbm [shape: f32[2,128,128], index: 3, kind: output, shape index: {}]
  %s4 = sld [smem:[#allocation0]]
  $region65: #{tpu_custom_call.1} parent=0
    _
  %s6 = ssub.s32 1, %s4
  %s7 = scalar_select 0, %s6, %s4
  $region1: #{tpu_custom_call.1} parent=0
    #allocation3 [shape = 'u8[32768]{0}', space=vmem, size = 0x8000, scoped, tag = 'input window, operand 0, single buffered']
    #allocation4 [shape = 's32[2]{0}', space=sflag, size = 0x8, scoped, tag = 'scoped memory for tpu_custom_call.1']
    #allocation5 [shape = 's32[2]{0}', space=sflag, size = 0x8, scoped, tag = 'scoped memory for tpu_custom_call.1']
    #allocation6 [shape = 'u8[65536]{0}', space=vmem, size = 0x10000, scoped, tag = 'input window, operand 1']
    #allocation7 [shape = 's32[2]{0}', space=sflag, size = 0x8, scoped, tag = 'scoped memory for tpu_custom_call.1']
    #allocation8 [shape = 'u8[32768]{0}', space=vmem, size = 0x8000, scoped, tag = 'input window, operand 2, single buffered']
    #allocation9 [shape = 'u8[131072]{0}', space=vmem, size = 0x20000, scoped, tag = 'output window, operand 0']
    %8 = vsyncpa [#allocation4], 0
    %9 = vsyncpa [#allocation7], 0
    %s10 = scalar_lea.sflag [#allocation7], 1
    %11 = vsyncpa %s10, 0
    %12 = vsyncpa [#allocation5], 0
    %s13 = scalar_lea.sflag [#allocation5], 1
    %14 = vsyncpa %s13, 0
    loop: start=0, step=1, limit=4
    $region2: #{tpu_custom_call.1} parent=1 // loop_pre_header
      _
    $region3: #{tpu_custom_call.1} parent=1 // loop_header
      %s16 = sphi 0, %s20
      %p17 = scmp.ge.s32.totalorder %s16, 4
      %s23 = sphi 0, %s42
      %s24 = sphi 0, %s38
      %s25 = sphi 0, %s34
      %s26 = sphi 0, %s23
      %s27 = sphi 0, %s24
      %s28 = sphi 0, %s25
      %s29 = sphi 0, %s26
      %s30 = sphi 0, %s27
      %s31 = sphi 0, %s28
      %s47 = sphi 0, %s49
      %s50 = sphi 0, %s47
      %s51 = sphi 0, %s50
      %s67 = sphi 0, %s51
      %s75 = sphi 0, %s77
      %s78 = sphi 0, %s75
      %s79 = sphi 0, %s78
      %s95 = sphi 0, %s79
      %s99 = sphi 0, %s99
      %s101 = sphi 0, %s99
      %s102 = sphi 0, %s101
      %s116 = sphi 0, %s102
      %s124 = sphi 0, %s126
      %s127 = sphi 0, %s124
      %s128 = sphi 0, %s127
      %s144 = sphi 0, %s128
    $region4: #{tpu_custom_call.1} parent=1 // loop_header_branch
      %19 = sbr.rel (%p17) target = $region8
    $region5: #{tpu_custom_call.1} parent=1 // loop_body
      %s21 = ssub.s32 %s16, 1
      %s22 = ssub.s32 %s16, 2
      %s32 = sadd.s32 1, %s25
      %p33 = scmp.ge.s32.totalorder %s32, 1
      %s34 = scalar_select %p33, 0, %s32
      %s35 = sadd.s32 1, %s24
      %s36 = scalar_select %p33, %s35, %s24
      %p37 = scmp.ge.s32.totalorder %s36, 1
      %s38 = scalar_select %p37, 0, %s36
      %s39 = sadd.s32 1, %s23
      %s40 = scalar_select %p37, %s39, %s23
      %p41 = scmp.ge.s32.totalorder %s40, 2
      %s42 = scalar_select %p41, 0, %s40
      %s43 = ssub.s32 %s24, %s38
      %s44 = ssub.s32 %s25, %s34
      %s45 = sor.u32 %s43, %s44
      %p46 = scmp.eq.s32.totalorder %s45, 0
      %s48 = sadd.s32 %s47, 1
      %s49 = scalar_select %p46, %s47, %s48
      %p52 = pneg %p46
      %p53 = scmp.eq.s32.totalorder %s16, 1
      %p54 = por %p52, %p53
      %p55 = scmp.ne.s32.totalorder %s47, %s50
      %p56 = scmp.eq.s32.totalorder %s16, 0
      %p57 = por %p55, %p56
      %p58 = scmp.ne.s32.totalorder %s47, %s50
      %p59 = scmp.eq.s32.totalorder %s21, 1
      %p60 = por %p58, %p59
      %p61 = scmp.ne.s32.totalorder %s50, %s51
      %p62 = scmp.eq.s32.totalorder %s21, 0
      %p63 = por %p61, %p62
      %p64 = scmp.ne.s32.totalorder %s50, %s51
      %p65 = scmp.eq.s32.totalorder %s22, 1
      %p66 = por %p64, %p65
      %p68 = scmp.ne.s32.totalorder %s51, %s67
      %p69 = scmp.eq.s32.totalorder %s22, 0
      %p70 = por %p68, %p69
      %s71 = ssub.s32 %s23, %s42
      %s72 = ssub.s32 %s25, %s34
      %s73 = sor.u32 %s71, %s72
      %p74 = scmp.eq.s32.totalorder %s73, 0
      %s76 = sadd.s32 %s75, 1
      %s77 = scalar_select %p74, %s75, %s76
      %p80 = pneg %p74
      %p81 = scmp.eq.s32.totalorder %s16, 1
      %p82 = por %p80, %p81
      %p83 = scmp.ne.s32.totalorder %s75, %s78
      %p84 = scmp.eq.s32.totalorder %s16, 0
      %p85 = por %p83, %p84
      %p86 = scmp.ne.s32.totalorder %s75, %s78
      %p87 = scmp.eq.s32.totalorder %s21, 1
      %p88 = por %p86, %p87
      %p89 = scmp.ne.s32.totalorder %s78, %s79
      %p90 = scmp.eq.s32.totalorder %s21, 0
      %p91 = por %p89, %p90
      %p92 = scmp.ne.s32.totalorder %s78, %s79
      %p93 = scmp.eq.s32.totalorder %s22, 1
      %p94 = por %p92, %p93
      %p96 = scmp.ne.s32.totalorder %s79, %s95
      %p97 = scmp.eq.s32.totalorder %s22, 0
      %p98 = por %p96, %p97
      %s100 = sadd.s32 %s99, 1
      %p103 = scmp.eq.s32.totalorder %s16, 1
      %p104 = scmp.ne.s32.totalorder %s99, %s101
      %p105 = scmp.eq.s32.totalorder %s16, 0
      %p106 = por %p104, %p105
      %p107 = scmp.ne.s32.totalorder %s99, %s101
      %p108 = scmp.eq.s32.totalorder %s21, 1
      %p109 = por %p107, %p108
      %p110 = scmp.ne.s32.totalorder %s101, %s102
      %p111 = scmp.eq.s32.totalorder %s21, 0
      %p112 = por %p110, %p111
      %p113 = scmp.ne.s32.totalorder %s101, %s102
      %p114 = scmp.eq.s32.totalorder %s22, 1
      %p115 = por %p113, %p114
      %p117 = scmp.ne.s32.totalorder %s102, %s116
      %p118 = scmp.eq.s32.totalorder %s22, 0
      %p119 = por %p117, %p118
      %s120 = ssub.s32 %s23, %s42
      %s121 = ssub.s32 %s24, %s38
      %s122 = sor.u32 %s120, %s121
      %p123 = scmp.eq.s32.totalorder %s122, 0
      %s125 = sadd.s32 %s124, 1
      %s126 = scalar_select %p123, %s124, %s125
      %p129 = pneg %p123
      %p130 = scmp.eq.s32.totalorder %s16, 1
      %p131 = por %p129, %p130
      %p132 = scmp.ne.s32.totalorder %s124, %s127
      %p133 = scmp.eq.s32.totalorder %s16, 0
      %p134 = por %p132, %p133
      %p135 = scmp.ne.s32.totalorder %s124, %s127
      %p136 = scmp.eq.s32.totalorder %s21, 1
      %p137 = por %p135, %p136
      %p138 = scmp.ne.s32.totalorder %s127, %s128
      %p139 = scmp.eq.s32.totalorder %s21, 0
      %p140 = por %p138, %p139
      %p141 = scmp.ne.s32.totalorder %s127, %s128
      %p142 = scmp.eq.s32.totalorder %s22, 1
      %p143 = por %p141, %p142
      %p145 = scmp.ne.s32.totalorder %s128, %s144
      %p146 = scmp.eq.s32.totalorder %s22, 0
      %p147 = por %p145, %p146
      %p148 = scmp.le.s32.totalorder 1, %s16
      %p149 = scmp.lt.s32.totalorder %s16, 3
      %p150 = pnand %p148, %p149
      %p151 = pneg %p150
      // Predicated region
      $region9: #{tpu_custom_call.1} parent=5 // pred_check
        _
      $region10: #{tpu_custom_call.1} parent=5 // pred_check_branch
        %153 = sbr.rel (%p150) target = $region12
      $region11: #{tpu_custom_call.1} parent=5 // pred_region
        %s154 = ssub.s32 %s16, 1
        // Predicated region
        $region13: #{tpu_custom_call.1} parent=11 // pred_check
          %p155 = pneg %p63
        $region14: #{tpu_custom_call.1} parent=11 // pred_check_branch
          %157 = sbr.rel (%p155) target = $region16
        $region15: #{tpu_custom_call.1} parent=11 // pred_region
          %s158 = smul.u32 16, %s27
          %s160 = ssub.s32 1024, 1024
          %161 = vsyncadd [#allocation4], %s160
          %s162 = sadd.s32 %s28, %s158
          %s163 = smul.addr %s162, 64
          %s164 = scalar_lea.hbm %s0, %s163
          %s165 = sshll.u32 [#allocation3], 4
          %s166 = int_to_ptr.vmem [resolvable:$true] %s165
          %171 = dma.hbm_to_vmem [thread:$0]  %s164, 1024, %s166, [#allocation4], 64, 64, 4
        $region16: #{tpu_custom_call.1} parent=11 // pred_fallthru
          _
        // Predicated region
        $region17: #{tpu_custom_call.1} parent=11 // pred_check
          %p172 = pneg %p112
        $region18: #{tpu_custom_call.1} parent=11 // pred_check_branch
          %174 = sbr.rel (%p172) target = $region20
        $region19: #{tpu_custom_call.1} parent=11 // pred_region
          %s176 = ssub.s32 1024, 1024
          %177 = vsyncadd [#allocation7], %s176
          %s178 = sshll.u32 [#allocation8], 4
          %s179 = int_to_ptr.vmem [resolvable:$true] %s178
          %184 = dma.hbm_to_vmem [thread:$0]  %s2, 1024, %s179, [#allocation7], 64, 64, 4
        $region20: #{tpu_custom_call.1} parent=11 // pred_fallthru
          _
      $region12: #{tpu_custom_call.1} parent=5 // pred_fallthru
        _
      %p185 = scmp.lt.s32.totalorder %s16, 2
      // Predicated region
      $region21: #{tpu_custom_call.1} parent=5 // pred_check
        %p186 = pneg %p185
      $region22: #{tpu_custom_call.1} parent=5 // pred_check_branch
        %188 = sbr.rel (%p186) target = $region24
      $region23: #{tpu_custom_call.1} parent=5 // pred_region
        // Predicated region
        $region25: #{tpu_custom_call.1} parent=23 // pred_check
          %p189 = pneg %p85
        $region26: #{tpu_custom_call.1} parent=23 // pred_check_branch
          %191 = sbr.rel (%p189) target = $region28
        $region27: #{tpu_custom_call.1} parent=23 // pred_region
          %s192 = sand.u32 %s16, 1
          %s193 = scalar_lea.sflag [#allocation7], %s192
          %s194 = sand.u32 %s75, 1
          %s195 = smul.addr %s194, 64
          %s196 = scalar_lea.vmem [#allocation6], %s195
          %s197 = smul.u32 16, %s25
          %s199 = ssub.s32 1024, 1024
          %200 = vsyncadd %s193, %s199
          %s201 = smul.addr %s23, 16
          %s202 = sadd.s32 %s197, %s201
          %s203 = smul.addr %s202, 64
          %s204 = scalar_lea.hbm %s1, %s203
          %s205 = sshll.u32 %s196, 4
          %s206 = int_to_ptr.vmem [resolvable:$true] %s205
          %211 = dma.hbm_to_vmem [thread:$0]  %s204, 1024, %s206, %s193, 64, 64, 4
        $region28: #{tpu_custom_call.1} parent=23 // pred_fallthru
          _
      $region24: #{tpu_custom_call.1} parent=5 // pred_fallthru
        _
      %p212 = scmp.le.s32.totalorder 1, %s16
      %p213 = scmp.lt.s32.totalorder %s16, 3
      %p214 = pnand %p212, %p213
      %p215 = pneg %p214
      // Predicated region
      $region29: #{tpu_custom_call.1} parent=5 // pred_check
        _
      $region30: #{tpu_custom_call.1} parent=5 // pred_check_branch
        %217 = sbr.rel (%p214) target = $region32
      $region31: #{tpu_custom_call.1} parent=5 // pred_region
        %s218 = ssub.s32 %s16, 1
        // Predicated region
        $region33: #{tpu_custom_call.1} parent=31 // pred_check
          %p219 = pneg %p63
        $region34: #{tpu_custom_call.1} parent=31 // pred_check_branch
          %221 = sbr.rel (%p219) target = $region36
        $region35: #{tpu_custom_call.1} parent=31 // pred_region
          %222 = dma.done [#allocation4], 1024
        $region36: #{tpu_custom_call.1} parent=31 // pred_fallthru
          _
        %s223 = sand.u32 %s21, 1
        %s224 = scalar_lea.sflag [#allocation7], %s223
        %s225 = sand.u32 %s78, 1
        %s226 = smul.addr %s225, 64
        %s227 = scalar_lea.vmem [#allocation6], %s226
        // Predicated region
        $region37: #{tpu_custom_call.1} parent=31 // pred_check
          %p228 = pneg %p91
        $region38: #{tpu_custom_call.1} parent=31 // pred_check_branch
          %230 = sbr.rel (%p228) target = $region40
        $region39: #{tpu_custom_call.1} parent=31 // pred_region
          %231 = dma.done %s224, 1024
        $region40: #{tpu_custom_call.1} parent=31 // pred_fallthru
          _
        // Predicated region
        $region41: #{tpu_custom_call.1} parent=31 // pred_check
          %p232 = pneg %p112
        $region42: #{tpu_custom_call.1} parent=31 // pred_check_branch
          %234 = sbr.rel (%p232) target = $region44
        $region43: #{tpu_custom_call.1} parent=31 // pred_region
          %235 = dma.done [#allocation7], 1024
        $region44: #{tpu_custom_call.1} parent=31 // pred_fallthru
          _
        %p236 = pneg %p63
        %p237 = pneg %p60
        %s238 = sand.u32 %s21, 1
        %s239 = scalar_lea.sflag [#allocation7], %s238
        %s240 = sand.u32 %s78, 1
        %s241 = smul.addr %s240, 64
        %s242 = scalar_lea.vmem [#allocation6], %s241
        %p243 = pneg %p91
        %p244 = pneg %p88
        %p245 = pneg %p112
        %p246 = pneg %p109
        %p247 = pneg %p140
        %p248 = pneg %p137
        %s249 = sand.u32 %s127, 1
        %s250 = scalar_lea.sflag [#allocation5], %s249
        %s251 = sand.u32 %s127, 1
        %s252 = smul.addr %s251, 128
        %s253 = scalar_lea.vmem [#allocation9], %s252
        %s254 = smul.u32 16, %s27
        %s255 = smul.u32 16, %s28
        %s256 = smul.u32 16, %s27
        %p258 = scmp.eq.s32.totalorder %s28, 0
        // Predicated region
        $region45: #{tpu_custom_call.1} parent=31 // pred_check
          %p259 = pneg %p258
        $region46: #{tpu_custom_call.1} parent=31 // pred_check_branch
          %261 = sbr.rel (%p259) target = $region48
        $region47: #{tpu_custom_call.1} parent=31 // pred_region
          %262 = vst [vmem:[#allocation2] sm:$0xff] 0.0
          %263 = vst [vmem:[#allocation2 + $0x8] sm:$0xff] 0.0
          %264 = vst [vmem:[#allocation2 + $0x10] sm:$0xff] 0.0
          %265 = vst [vmem:[#allocation2 + $0x18] sm:$0xff] 0.0
          %266 = vst [vmem:[#allocation2 + $0x20] sm:$0xff] 0.0
          %267 = vst [vmem:[#allocation2 + $0x28] sm:$0xff] 0.0
          %268 = vst [vmem:[#allocation2 + $0x30] sm:$0xff] 0.0
          %269 = vst [vmem:[#allocation2 + $0x38] sm:$0xff] 0.0
          %270 = vst [vmem:[#allocation2 + $0x40] sm:$0xff] 0.0
          %271 = vst [vmem:[#allocation2 + $0x48] sm:$0xff] 0.0
          %272 = vst [vmem:[#allocation2 + $0x50] sm:$0xff] 0.0
          %273 = vst [vmem:[#allocation2 + $0x58] sm:$0xff] 0.0
          %274 = vst [vmem:[#allocation2 + $0x60] sm:$0xff] 0.0
          %275 = vst [vmem:[#allocation2 + $0x68] sm:$0xff] 0.0
          %276 = vst [vmem:[#allocation2 + $0x70] sm:$0xff] 0.0
          %277 = vst [vmem:[#allocation2 + $0x78] sm:$0xff] 0.0
        $region48: #{tpu_custom_call.1} parent=31 // pred_fallthru
          _
        %v278 = vld [vmem:[#allocation2] sm:$0xff]
        %v279 = vld [vmem:[#allocation2 + $0x8] sm:$0xff]
        %v280 = vld [vmem:[#allocation2 + $0x10] sm:$0xff]
        %v281 = vld [vmem:[#allocation2 + $0x18] sm:$0xff]
        %v282 = vld [vmem:[#allocation2 + $0x20] sm:$0xff]
        %v283 = vld [vmem:[#allocation2 + $0x28] sm:$0xff]
        %v284 = vld [vmem:[#allocation2 + $0x30] sm:$0xff]
        %v285 = vld [vmem:[#allocation2 + $0x38] sm:$0xff]
        %v286 = vld [vmem:[#allocation2 + $0x40] sm:$0xff]
        %v287 = vld [vmem:[#allocation2 + $0x48] sm:$0xff]
        %v288 = vld [vmem:[#allocation2 + $0x50] sm:$0xff]
        %v289 = vld [vmem:[#allocation2 + $0x58] sm:$0xff]
        %v290 = vld [vmem:[#allocation2 + $0x60] sm:$0xff]
        %v291 = vld [vmem:[#allocation2 + $0x68] sm:$0xff]
        %v292 = vld [vmem:[#allocation2 + $0x70] sm:$0xff]
        %v293 = vld [vmem:[#allocation2 + $0x78] sm:$0xff]
        %v294 = vld [vmem:[#allocation3] sm:$0xf]
        %v295 = vld [vmem:[#allocation3 + $0x4] sm:$0xf]
        %v296 = vld [vmem:[#allocation3 + $0x8] sm:$0xf]
        %v297 = vld [vmem:[#allocation3 + $0xc] sm:$0xf]
        %v298 = vld [vmem:[#allocation3 + $0x10] sm:$0xf]
        %v299 = vld [vmem:[#allocation3 + $0x14] sm:$0xf]
        %v300 = vld [vmem:[#allocation3 + $0x18] sm:$0xf]
        %v301 = vld [vmem:[#allocation3 + $0x1c] sm:$0xf]
        %v302 = vld [vmem:[#allocation3 + $0x20] sm:$0xf]
        %v303 = vld [vmem:[#allocation3 + $0x24] sm:$0xf]
        %v304 = vld [vmem:[#allocation3 + $0x28] sm:$0xf]
        %v305 = vld [vmem:[#allocation3 + $0x2c] sm:$0xf]
        %v306 = vld [vmem:[#allocation3 + $0x30] sm:$0xf]
        %v307 = vld [vmem:[#allocation3 + $0x34] sm:$0xf]
        %v308 = vld [vmem:[#allocation3 + $0x38] sm:$0xf]
        %v309 = vld [vmem:[#allocation3 + $0x3c] sm:$0xf]
        %v310 = vld [vmem:[%s227] sm:$0xf]
        %v311 = vld [vmem:[%s227 + $0x4] sm:$0xf]
        %v312 = vld [vmem:[%s227 + $0x8] sm:$0xf]
        %v313 = vld [vmem:[%s227 + $0xc] sm:$0xf]
        %v314 = vld [vmem:[%s227 + $0x10] sm:$0xf]
        %v315 = vld [vmem:[%s227 + $0x14] sm:$0xf]
        %v316 = vld [vmem:[%s227 + $0x18] sm:$0xf]
        %v317 = vld [vmem:[%s227 + $0x1c] sm:$0xf]
        %v318 = vld [vmem:[%s227 + $0x20] sm:$0xf]
        %v319 = vld [vmem:[%s227 + $0x24] sm:$0xf]
        %v320 = vld [vmem:[%s227 + $0x28] sm:$0xf]
        %v321 = vld [vmem:[%s227 + $0x2c] sm:$0xf]
        %v322 = vld [vmem:[%s227 + $0x30] sm:$0xf]
        %v323 = vld [vmem:[%s227 + $0x34] sm:$0xf]
        %v324 = vld [vmem:[%s227 + $0x38] sm:$0xf]
        %v325 = vld [vmem:[%s227 + $0x3c] sm:$0xf]
        %v342 = vunpack.c.l.b16 %v294
        %v343 = vunpack.c.l.b16 %v295
        %v344 = vunpack.c.l.b16 %v296
        %v345 = vunpack.c.l.b16 %v297
        %v346 = vunpack.c.l.b16 %v298
        %v347 = vunpack.c.l.b16 %v299
        %v348 = vunpack.c.l.b16 %v300
        %v349 = vunpack.c.l.b16 %v301
        %v350 = vunpack.c.l.b16 %v302
        %v351 = vunpack.c.l.b16 %v303
        %v352 = vunpack.c.l.b16 %v304
        %v353 = vunpack.c.l.b16 %v305
        %v354 = vunpack.c.l.b16 %v306
        %v355 = vunpack.c.l.b16 %v307
        %v356 = vunpack.c.l.b16 %v308
        %v357 = vunpack.c.l.b16 %v309
        %v358 = vpack.c.b16 %v343, %v342
        %v359 = vpack.c.b16 %v345, %v344
        %v360 = vpack.c.b16 %v347, %v346
        %v361 = vpack.c.b16 %v349, %v348
        %v362 = vpack.c.b16 %v351, %v350
        %v363 = vpack.c.b16 %v353, %v352
        %v364 = vpack.c.b16 %v355, %v354
        %v365 = vpack.c.b16 %v357, %v356
        %v390 = vunpack.c.l.b16 %v310
        %v391 = vunpack.c.l.b16 %v311
        %v392 = vunpack.c.l.b16 %v312
        %v393 = vunpack.c.l.b16 %v313
        %v394 = vunpack.c.l.b16 %v314
        %v395 = vunpack.c.l.b16 %v315
        %v396 = vunpack.c.l.b16 %v316
        %v397 = vunpack.c.l.b16 %v317
        %v398 = vunpack.c.l.b16 %v318
        %v399 = vunpack.c.l.b16 %v319
        %v400 = vunpack.c.l.b16 %v320
        %v401 = vunpack.c.l.b16 %v321
        %v402 = vunpack.c.l.b16 %v322
        %v403 = vunpack.c.l.b16 %v323
        %v404 = vunpack.c.l.b16 %v324
        %v405 = vunpack.c.l.b16 %v325
        %v406 = vpack.c.b16 %v391, %v390
        %v407 = vpack.c.b16 %v393, %v392
        %v408 = vpack.c.b16 %v395, %v394
        %v409 = vpack.c.b16 %v397, %v396
        %v410 = vpack.c.b16 %v399, %v398
        %v411 = vpack.c.b16 %v401, %v400
        %v412 = vpack.c.b16 %v403, %v402
        %v413 = vpack.c.b16 %v405, %v404
        %422 = vmatprep.subr.bf16.mxu0 0
        %423 = vmatpush1.bf16.msra.mxu0 %v406
        %424 = vmatprep.subr.bf16.mxu0 0
        %425 = vmatpush1.bf16.msra.mxu0 %v407
        %426 = vmatprep.subr.bf16.mxu0 0
        %427 = vmatpush1.bf16.msra.mxu0 %v408
        %428 = vmatprep.subr.bf16.mxu0 0
        %429 = vmatpush1.bf16.msra.mxu0 %v409
        %430 = vmatprep.subr.bf16.mxu0 0
        %431 = vmatpush1.bf16.msra.mxu0 %v410
        %432 = vmatprep.subr.bf16.mxu0 0
        %433 = vmatpush1.bf16.msra.mxu0 %v411
        %434 = vmatprep.subr.bf16.mxu0 0
        %435 = vmatpush1.bf16.msra.mxu0 %v412
        %436 = vmatprep.subr.bf16.mxu0 0
        %437 = vmatpush1.bf16.msra.mxu0 %v413
        %438 = vmatprep.subr.bf16.mxu0 0
        %439 = vmatpush1.bf16.msra.mxu0 0
        %440 = vmatprep.subr.bf16.mxu0 0
        %441 = vmatpush1.bf16.msra.mxu0 0
        %442 = vmatprep.subr.bf16.mxu0 0
        %443 = vmatpush1.bf16.msra.mxu0 0
        %444 = vmatprep.subr.bf16.mxu0 0
        %445 = vmatpush1.bf16.msra.mxu0 0
        %446 = vmatprep.subr.bf16.mxu0 0
        %447 = vmatpush1.bf16.msra.mxu0 0
        %448 = vmatprep.subr.bf16.mxu0 0
        %449 = vmatpush1.bf16.msra.mxu0 0
        %450 = vmatprep.subr.bf16.mxu0 0
        %451 = vmatpush1.bf16.msra.mxu0 0
        %452 = vmatprep.subr.bf16.mxu0 0
        %453 = vmatpush1.bf16.msra.mxu0 0
        %454 = vmatprep.mubr.bf16.mxu0 0
        %455 = vmatmul.mubr.bf16.gmra.mrb[0].mxu0 %v358
        %v456 = vpop.f32.mrb[0].mxu0
        %v457 = vadd.f32 0.0, %v456
        %v458 = vpop.f32.mrb[0].mxu0
        %v459 = vpop.f32.mrb[0].mxu0
        %v460 = vadd.f32 0.0, %v459
        %v461 = vpop.f32.mrb[0].mxu0
        %462 = vmatprep.mubr.bf16.mxu0 0
        %463 = vmatmul.mubr.bf16.gmra.mrb[0].mxu0 %v359
        %v464 = vpop.f32.mrb[0].mxu0
        %v465 = vadd.f32 0.0, %v464
        %v466 = vpop.f32.mrb[0].mxu0
        %v467 = vpop.f32.mrb[0].mxu0
        %v468 = vadd.f32 0.0, %v467
        %v469 = vpop.f32.mrb[0].mxu0
        %470 = vmatprep.mubr.bf16.mxu0 0
        %471 = vmatmul.mubr.bf16.gmra.mrb[0].mxu0 %v360
        %v472 = vpop.f32.mrb[0].mxu0
        %v473 = vadd.f32 0.0, %v472
        %v474 = vpop.f32.mrb[0].mxu0
        %v475 = vpop.f32.mrb[0].mxu0
        %v476 = vadd.f32 0.0, %v475
        %v477 = vpop.f32.mrb[0].mxu0
        %478 = vmatprep.mubr.bf16.mxu0 0
        %479 = vmatmul.mubr.bf16.gmra.mrb[0].mxu0 %v361
        %v480 = vpop.f32.mrb[0].mxu0
        %v481 = vadd.f32 0.0, %v480
        %v482 = vpop.f32.mrb[0].mxu0
        %v483 = vpop.f32.mrb[0].mxu0
        %v484 = vadd.f32 0.0, %v483
        %v485 = vpop.f32.mrb[0].mxu0
        %486 = vmatprep.mubr.bf16.mxu0 0
        %487 = vmatmul.mubr.bf16.gmra.mrb[0].mxu0 %v362
        %v488 = vpop.f32.mrb[0].mxu0
        %v489 = vadd.f32 0.0, %v488
        %v490 = vpop.f32.mrb[0].mxu0
        %v491 = vpop.f32.mrb[0].mxu0
        %v492 = vadd.f32 0.0, %v491
        %v493 = vpop.f32.mrb[0].mxu0
        %494 = vmatprep.mubr.bf16.mxu0 0
        %495 = vmatmul.mubr.bf16.gmra.mrb[0].mxu0 %v363
        %v496 = vpop.f32.mrb[0].mxu0
        %v497 = vadd.f32 0.0, %v496
        %v498 = vpop.f32.mrb[0].mxu0
        %v499 = vpop.f32.mrb[0].mxu0
        %v500 = vadd.f32 0.0, %v499
        %v501 = vpop.f32.mrb[0].mxu0
        %502 = vmatprep.mubr.bf16.mxu0 0
        %503 = vmatmul.mubr.bf16.gmra.mrb[0].mxu0 %v364
        %v504 = vpop.f32.mrb[0].mxu0
        %v505 = vadd.f32 0.0, %v504
        %v506 = vpop.f32.mrb[0].mxu0
        %v507 = vpop.f32.mrb[0].mxu0
        %v508 = vadd.f32 0.0, %v507
        %v509 = vpop.f32.mrb[0].mxu0
        %510 = vmatprep.mubr.bf16.mxu0 0
        %511 = vmatmul.mubr.bf16.gmra.mrb[0].mxu0 %v365
        %v512 = vpop.f32.mrb[0].mxu0
        %v513 = vadd.f32 0.0, %v512
        %v514 = vpop.f32.mrb[0].mxu0
        %v515 = vpop.f32.mrb[0].mxu0
        %v516 = vadd.f32 0.0, %v515
        %v517 = vpop.f32.mrb[0].mxu0
        %518 = vdwg.mxu0
        %v519 = vadd.f32 %v278, %v457
        %v520 = vadd.f32 %v279, %v460
        %v521 = vadd.f32 %v280, %v465
        %v522 = vadd.f32 %v281, %v468
        %v523 = vadd.f32 %v282, %v473
        %v524 = vadd.f32 %v283, %v476
        %v525 = vadd.f32 %v284, %v481
        %v526 = vadd.f32 %v285, %v484
        %v527 = vadd.f32 %v286, %v489
        %v528 = vadd.f32 %v287, %v492
        %v529 = vadd.f32 %v288, %v497
        %v530 = vadd.f32 %v289, %v500
        %v531 = vadd.f32 %v290, %v505
        %v532 = vadd.f32 %v291, %v508
        %v533 = vadd.f32 %v292, %v513
        %v534 = vadd.f32 %v293, %v516
        %535 = vst [vmem:[#allocation2] sm:$0xff] %v519
        %536 = vst [vmem:[#allocation2 + $0x8] sm:$0xff] %v520
        %537 = vst [vmem:[#allocation2 + $0x10] sm:$0xff] %v521
        %538 = vst [vmem:[#allocation2 + $0x18] sm:$0xff] %v522
        %539 = vst [vmem:[#allocation2 + $0x20] sm:$0xff] %v523
        %540 = vst [vmem:[#allocation2 + $0x28] sm:$0xff] %v524
        %541 = vst [vmem:[#allocation2 + $0x30] sm:$0xff] %v525
        %542 = vst [vmem:[#allocation2 + $0x38] sm:$0xff] %v526
        %543 = vst [vmem:[#allocation2 + $0x40] sm:$0xff] %v527
        %544 = vst [vmem:[#allocation2 + $0x48] sm:$0xff] %v528
        %545 = vst [vmem:[#allocation2 + $0x50] sm:$0xff] %v529
        %546 = vst [vmem:[#allocation2 + $0x58] sm:$0xff] %v530
        %547 = vst [vmem:[#allocation2 + $0x60] sm:$0xff] %v531
        %548 = vst [vmem:[#allocation2 + $0x68] sm:$0xff] %v532
        %549 = vst [vmem:[#allocation2 + $0x70] sm:$0xff] %v533
        %550 = vst [vmem:[#allocation2 + $0x78] sm:$0xff] %v534
        // Predicated region
        $region49: #{tpu_custom_call.1} parent=31 // pred_check
          %p551 = pneg %p258
        $region50: #{tpu_custom_call.1} parent=31 // pred_check_branch
          %553 = sbr.rel (%p551) target = $region52
        $region51: #{tpu_custom_call.1} parent=31 // pred_region
          %v554 = vld [vmem:[#allocation2] sm:$0xff]
          %v555 = vld [vmem:[#allocation2 + $0x8] sm:$0xff]
          %v556 = vld [vmem:[#allocation2 + $0x10] sm:$0xff]
          %v557 = vld [vmem:[#allocation2 + $0x18] sm:$0xff]
          %v558 = vld [vmem:[#allocation2 + $0x20] sm:$0xff]
          %v559 = vld [vmem:[#allocation2 + $0x28] sm:$0xff]
          %v560 = vld [vmem:[#allocation2 + $0x30] sm:$0xff]
          %v561 = vld [vmem:[#allocation2 + $0x38] sm:$0xff]
          %v562 = vld [vmem:[#allocation2 + $0x40] sm:$0xff]
          %v563 = vld [vmem:[#allocation2 + $0x48] sm:$0xff]
          %v564 = vld [vmem:[#allocation2 + $0x50] sm:$0xff]
          %v565 = vld [vmem:[#allocation2 + $0x58] sm:$0xff]
          %v566 = vld [vmem:[#allocation2 + $0x60] sm:$0xff]
          %v567 = vld [vmem:[#allocation2 + $0x68] sm:$0xff]
          %v568 = vld [vmem:[#allocation2 + $0x70] sm:$0xff]
          %v569 = vld [vmem:[#allocation2 + $0x78] sm:$0xff]
          %v570 = vpack.c.bf16 %v555, %v554
          %v571 = vpack.c.bf16 %v557, %v556
          %v572 = vpack.c.bf16 %v559, %v558
          %v573 = vpack.c.bf16 %v561, %v560
          %v574 = vpack.c.bf16 %v563, %v562
          %v575 = vpack.c.bf16 %v565, %v564
          %v576 = vpack.c.bf16 %v567, %v566
          %v577 = vpack.c.bf16 %v569, %v568
          %v578 = vld [vmem:[#allocation8] sm:$0xf]
          %v579 = vld [vmem:[#allocation8 + $0x4] sm:$0xf]
          %v580 = vld [vmem:[#allocation8 + $0x8] sm:$0xf]
          %v581 = vld [vmem:[#allocation8 + $0xc] sm:$0xf]
          %v582 = vld [vmem:[#allocation8 + $0x10] sm:$0xf]
          %v583 = vld [vmem:[#allocation8 + $0x14] sm:$0xf]
          %v584 = vld [vmem:[#allocation8 + $0x18] sm:$0xf]
          %v585 = vld [vmem:[#allocation8 + $0x1c] sm:$0xf]
          %v586 = vld [vmem:[#allocation8 + $0x20] sm:$0xf]
          %v587 = vld [vmem:[#allocation8 + $0x24] sm:$0xf]
          %v588 = vld [vmem:[#allocation8 + $0x28] sm:$0xf]
          %v589 = vld [vmem:[#allocation8 + $0x2c] sm:$0xf]
          %v590 = vld [vmem:[#allocation8 + $0x30] sm:$0xf]
          %v591 = vld [vmem:[#allocation8 + $0x34] sm:$0xf]
          %v592 = vld [vmem:[#allocation8 + $0x38] sm:$0xf]
          %v593 = vld [vmem:[#allocation8 + $0x3c] sm:$0xf]
          %v610 = vunpack.c.l.b16 %v578
          %v611 = vunpack.c.l.b16 %v579
          %v612 = vunpack.c.l.b16 %v580
          %v613 = vunpack.c.l.b16 %v581
          %v614 = vunpack.c.l.b16 %v582
          %v615 = vunpack.c.l.b16 %v583
          %v616 = vunpack.c.l.b16 %v584
          %v617 = vunpack.c.l.b16 %v585
          %v618 = vunpack.c.l.b16 %v586
          %v619 = vunpack.c.l.b16 %v587
          %v620 = vunpack.c.l.b16 %v588
          %v621 = vunpack.c.l.b16 %v589
          %v622 = vunpack.c.l.b16 %v590
          %v623 = vunpack.c.l.b16 %v591
          %v624 = vunpack.c.l.b16 %v592
          %v625 = vunpack.c.l.b16 %v593
          %v626 = vpack.c.b16 %v611, %v610
          %v627 = vpack.c.b16 %v613, %v612
          %v628 = vpack.c.b16 %v615, %v614
          %v629 = vpack.c.b16 %v617, %v616
          %v630 = vpack.c.b16 %v619, %v618
          %v631 = vpack.c.b16 %v621, %v620
          %v632 = vpack.c.b16 %v623, %v622
          %v633 = vpack.c.b16 %v625, %v624
          %642 = vmatprep.subr.bf16.mxu0 0
          %643 = vmatpush1.bf16.msra.mxu0 %v626
          %644 = vmatprep.subr.bf16.mxu0 0
          %645 = vmatpush1.bf16.msra.mxu0 %v627
          %646 = vmatprep.subr.bf16.mxu0 0
          %647 = vmatpush1.bf16.msra.mxu0 %v628
          %648 = vmatprep.subr.bf16.mxu0 0
          %649 = vmatpush1.bf16.msra.mxu0 %v629
          %650 = vmatprep.subr.bf16.mxu0 0
          %651 = vmatpush1.bf16.msra.mxu0 %v630
          %652 = vmatprep.subr.bf16.mxu0 0
          %653 = vmatpush1.bf16.msra.mxu0 %v631
          %654 = vmatprep.subr.bf16.mxu0 0
          %655 = vmatpush1.bf16.msra.mxu0 %v632
          %656 = vmatprep.subr.bf16.mxu0 0
          %657 = vmatpush1.bf16.msra.mxu0 %v633
          %658 = vmatprep.subr.bf16.mxu0 0
          %659 = vmatpush1.bf16.msra.mxu0 0
          %660 = vmatprep.subr.bf16.mxu0 0
          %661 = vmatpush1.bf16.msra.mxu0 0
          %662 = vmatprep.subr.bf16.mxu0 0
          %663 = vmatpush1.bf16.msra.mxu0 0
          %664 = vmatprep.subr.bf16.mxu0 0
          %665 = vmatpush1.bf16.msra.mxu0 0
          %666 = vmatprep.subr.bf16.mxu0 0
          %667 = vmatpush1.bf16.msra.mxu0 0
          %668 = vmatprep.subr.bf16.mxu0 0
          %669 = vmatpush1.bf16.msra.mxu0 0
          %670 = vmatprep.subr.bf16.mxu0 0
          %671 = vmatpush1.bf16.msra.mxu0 0
          %672 = vmatprep.subr.bf16.mxu0 0
          %673 = vmatpush1.bf16.msra.mxu0 0
          %674 = vmatprep.mubr.bf16.mxu0 0
          %675 = vmatmul.mubr.bf16.gmra.mrb[0].mxu0 %v570
          %v676 = vpop.f32.mrb[0].mxu0
          %v677 = vadd.f32 0.0, %v676
          %v678 = vpop.f32.mrb[0].mxu0
          %v679 = vpop.f32.mrb[0].mxu0
          %v680 = vadd.f32 0.0, %v679
          %v681 = vpop.f32.mrb[0].mxu0
          %682 = vmatprep.mubr.bf16.mxu0 0
          %683 = vmatmul.mubr.bf16.gmra.mrb[0].mxu0 %v571
          %v684 = vpop.f32.mrb[0].mxu0
          %v685 = vadd.f32 0.0, %v684
          %v686 = vpop.f32.mrb[0].mxu0
          %v687 = vpop.f32.mrb[0].mxu0
          %v688 = vadd.f32 0.0, %v687
          %v689 = vpop.f32.mrb[0].mxu0
          %690 = vmatprep.mubr.bf16.mxu0 0
          %691 = vmatmul.mubr.bf16.gmra.mrb[0].mxu0 %v572
          %v692 = vpop.f32.mrb[0].mxu0
          %v693 = vadd.f32 0.0, %v692
          %v694 = vpop.f32.mrb[0].mxu0
          %v695 = vpop.f32.mrb[0].mxu0
          %v696 = vadd.f32 0.0, %v695
          %v697 = vpop.f32.mrb[0].mxu0
          %698 = vmatprep.mubr.bf16.mxu0 0
          %699 = vmatmul.mubr.bf16.gmra.mrb[0].mxu0 %v573
          %v700 = vpop.f32.mrb[0].mxu0
          %v701 = vadd.f32 0.0, %v700
          %v702 = vpop.f32.mrb[0].mxu0
          %v703 = vpop.f32.mrb[0].mxu0
          %v704 = vadd.f32 0.0, %v703
          %v705 = vpop.f32.mrb[0].mxu0
          %706 = vmatprep.mubr.bf16.mxu0 0
          %707 = vmatmul.mubr.bf16.gmra.mrb[0].mxu0 %v574
          %v708 = vpop.f32.mrb[0].mxu0
          %v709 = vadd.f32 0.0, %v708
          %v710 = vpop.f32.mrb[0].mxu0
          %v711 = vpop.f32.mrb[0].mxu0
          %v712 = vadd.f32 0.0, %v711
          %v713 = vpop.f32.mrb[0].mxu0
          %714 = vmatprep.mubr.bf16.mxu0 0
          %715 = vmatmul.mubr.bf16.gmra.mrb[0].mxu0 %v575
          %v716 = vpop.f32.mrb[0].mxu0
          %v717 = vadd.f32 0.0, %v716
          %v718 = vpop.f32.mrb[0].mxu0
          %v719 = vpop.f32.mrb[0].mxu0
          %v720 = vadd.f32 0.0, %v719
          %v721 = vpop.f32.mrb[0].mxu0
          %722 = vmatprep.mubr.bf16.mxu0 0
          %723 = vmatmul.mubr.bf16.gmra.mrb[0].mxu0 %v576
          %v724 = vpop.f32.mrb[0].mxu0
          %v725 = vadd.f32 0.0, %v724
          %v726 = vpop.f32.mrb[0].mxu0
          %v727 = vpop.f32.mrb[0].mxu0
          %v728 = vadd.f32 0.0, %v727
          %v729 = vpop.f32.mrb[0].mxu0
          %730 = vmatprep.mubr.bf16.mxu0 0
          %731 = vmatmul.mubr.bf16.gmra.mrb[0].mxu0 %v577
          %v732 = vpop.f32.mrb[0].mxu0
          %v733 = vadd.f32 0.0, %v732
          %v734 = vpop.f32.mrb[0].mxu0
          %v735 = vpop.f32.mrb[0].mxu0
          %v736 = vadd.f32 0.0, %v735
          %v737 = vpop.f32.mrb[0].mxu0
          %738 = vdwg.mxu0
          %739 = vst [vmem:[%s253] sm:$0xff] %v677
          %740 = vst [vmem:[%s253 + $0x8] sm:$0xff] %v680
          %741 = vst [vmem:[%s253 + $0x10] sm:$0xff] %v685
          %742 = vst [vmem:[%s253 + $0x18] sm:$0xff] %v688
          %743 = vst [vmem:[%s253 + $0x20] sm:$0xff] %v693
          %744 = vst [vmem:[%s253 + $0x28] sm:$0xff] %v696
          %745 = vst [vmem:[%s253 + $0x30] sm:$0xff] %v701
          %746 = vst [vmem:[%s253 + $0x38] sm:$0xff] %v704
          %747 = vst [vmem:[%s253 + $0x40] sm:$0xff] %v709
          %748 = vst [vmem:[%s253 + $0x48] sm:$0xff] %v712
          %749 = vst [vmem:[%s253 + $0x50] sm:$0xff] %v717
          %750 = vst [vmem:[%s253 + $0x58] sm:$0xff] %v720
          %751 = vst [vmem:[%s253 + $0x60] sm:$0xff] %v725
          %752 = vst [vmem:[%s253 + $0x68] sm:$0xff] %v728
          %753 = vst [vmem:[%s253 + $0x70] sm:$0xff] %v733
          %754 = vst [vmem:[%s253 + $0x78] sm:$0xff] %v736
        $region52: #{tpu_custom_call.1} parent=31 // pred_fallthru
          _
        %s755 = sand.u32 %s127, 1
        %s756 = scalar_lea.sflag [#allocation5], %s755
        %s757 = sand.u32 %s127, 1
        %s758 = smul.addr %s757, 128
        %s759 = scalar_lea.vmem [#allocation9], %s758
        // Predicated region
        $region53: #{tpu_custom_call.1} parent=31 // pred_check
          %p760 = pneg %p137
        $region54: #{tpu_custom_call.1} parent=31 // pred_check_branch
          %762 = sbr.rel (%p760) target = $region56
        $region55: #{tpu_custom_call.1} parent=31 // pred_region
          %s763 = smul.u32 16, %s27
          %s765 = ssub.s32 2048, 2048
          %766 = vsyncadd %s756, %s765
          %s767 = smul.addr %s26, 16
          %s768 = sadd.s32 %s763, %s767
          %s769 = smul.addr %s768, 128
          %s770 = scalar_lea.hbm %s3, %s769
          %s771 = sshll.u32 %s759, 4
          %s772 = int_to_ptr.vmem [resolvable:$true] %s771
          %777 = dma.vmem_to_hbm [thread:$0]  %s772, 2048, %s770, %s756, 128, 128, 8
        $region56: #{tpu_custom_call.1} parent=31 // pred_fallthru
          _
      $region32: #{tpu_custom_call.1} parent=5 // pred_fallthru
        _
      %p778 = scmp.le.s32.totalorder 2, %s16
      // Predicated region
      $region57: #{tpu_custom_call.1} parent=5 // pred_check
        %p779 = pneg %p778
      $region58: #{tpu_custom_call.1} parent=5 // pred_check_branch
        %781 = sbr.rel (%p779) target = $region60
      $region59: #{tpu_custom_call.1} parent=5 // pred_region
        %s782 = ssub.s32 %s16, 2
        // Predicated region
        $region61: #{tpu_custom_call.1} parent=59 // pred_check
          %p783 = pneg %p143
        $region62: #{tpu_custom_call.1} parent=59 // pred_check_branch
          %785 = sbr.rel (%p783) target = $region64
        $region63: #{tpu_custom_call.1} parent=59 // pred_region
          %s786 = sand.u32 %s128, 1
          %s787 = scalar_lea.sflag [#allocation5], %s786
          %s788 = sand.u32 %s128, 1
          %s789 = smul.addr %s788, 128
          %s790 = scalar_lea.vmem [#allocation9], %s789
          %791 = dma.done %s787, 2048
        $region64: #{tpu_custom_call.1} parent=59 // pred_fallthru
          _
      $region60: #{tpu_custom_call.1} parent=5 // pred_fallthru
        _
    $region6: #{tpu_custom_call.1} parent=1 // loop_footer
      %s20 = sadd.s32 1, %s16
    $region7: #{tpu_custom_call.1} parent=1 // loop_footer_branch
      %15 = sbr.rel target = $region3
    $region8: #{tpu_custom_call.1} parent=1 // loop_exit
      _
    %792 = vsyncpa [#allocation4], 1
    %s793 = scalar_lea.sflag [#allocation4], 1
    %794 = vsyncpa %s793, 1
    %795 = vsyncpa [#allocation7], 1
    %s796 = scalar_lea.sflag [#allocation7], 1
    %797 = vsyncpa %s796, 1
    %798 = vsyncpa [#allocation5], 1
    %s799 = scalar_lea.sflag [#allocation5], 1
    %800 = vsyncpa %s799, 1

</llo_original>
